<compile_context>
chip_gen: v7x
topology: tpu7x:2x2x1
jax: 0.10.0
libtpu: 0.0.40
codegen_flags: <defaults>
</compile_context>

<pallas_src>
import jax
import jax.numpy as jnp
from jax.experimental import pallas as pl
from jax.experimental.pallas import tpu as pltpu


def _channel_only_kernel(x_ref, wq_ref, wv_ref, bv_ref, wz_ref, bz_ref,
                         gamma_ref, beta_ref, o_ref):
    # x block: (1, C, HW) -> (C, HW); channels on sublanes, spatial on lanes.
    x = x_ref[0]

    # ch_wq (1x1 conv to one channel): q[s] = sum_c wq[c] * x[c, s]  -> (1, HW)
    # (bq omitted: a constant shift cancels in the softmax below.)
    q = jnp.sum(x * wq_ref[...], axis=0, keepdims=True)

    # softmax over the spatial (lane) axis
    q = q - jnp.max(q, axis=1, keepdims=True)
    e = jnp.exp(q)
    attn = e / jnp.sum(e, axis=1, keepdims=True)                    # (1, HW)

    # Spatial-weighted sum of x (sum(attn) == 1), then the tiny projections:
    # z = Wv @ s + bv  is algebraically identical to (Wv x + bv) @ attn.
    s = jnp.sum(x * attn, axis=1, keepdims=True)                    # (C, 1)
    z = jnp.dot(wv_ref[...], s,
                preferred_element_type=jnp.float32) + bv_ref[...]   # (C/2, 1)

    # ch_wz: (C, C/2) @ (C/2, 1) -> (C, 1)
    wz = jnp.dot(wz_ref[...], z,
                 preferred_element_type=jnp.float32) + bz_ref[...]

    # LayerNorm over the channel axis (eps = 1e-5, affine), then sigmoid.
    mu = jnp.mean(wz, axis=0, keepdims=True)
    var = jnp.mean((wz - mu) ** 2, axis=0, keepdims=True)
    ln = (wz - mu) * jax.lax.rsqrt(var + 1e-5) * gamma_ref[...] + beta_ref[...]
    weight = jax.nn.sigmoid(ln)                                     # (C, 1)

    # channel_out = channel_weight * x  (per-channel gate, broadcast over HW)
    o_ref[0] = (x * weight).astype(o_ref.dtype)


@jax.jit
def channel_only_branch(x_nchw, wv, bv, wq, bq, wz, bz, gamma, beta):
    del bq  # constant shift before the spatial softmax -> exactly cancels
    b, c, h, w = x_nchw.shape
    hw = h * w
    c_half = c // 2

    # NCHW -> (b, c, hw): pure reshape, no transpose / extra HBM pass.
    x = x_nchw.reshape(b, c, hw).astype(jnp.float32)

    # Weight prep (all tiny): column / matrix layouts that broadcast along
    # lanes (HW) or contract over channels directly.
    wq_col = wq.reshape(1, c).T.astype(jnp.float32)        # (c, 1)
    wv_m = wv.reshape(c_half, c).astype(jnp.float32)       # (c//2, c)
    bv_col = bv.reshape(c_half, 1).astype(jnp.float32)     # (c//2, 1)
    wz_m = wz.reshape(c, c_half).astype(jnp.float32)       # (c, c//2)
    bz_col = bz.reshape(c, 1).astype(jnp.float32)          # (c, 1)
    gamma_col = gamma.reshape(c, 1).astype(jnp.float32)    # (c, 1)
    beta_col = beta.reshape(c, 1).astype(jnp.float32)      # (c, 1)

    # Explicit VMEM budget: 2x double-buffered input slab + 2x output slab
    # + weights + headroom.  Don't rely on the scoped default.
    slab_bytes = c * hw * 4
    vmem_limit = int(min(100 * 2**20, max(8 * 2**20, 6 * slab_bytes)))

    out = pl.pallas_call(
        _channel_only_kernel,
        out_shape=jax.ShapeDtypeStruct((b, c, hw), jnp.float32),
        grid_spec=pltpu.PrefetchScalarGridSpec(
            num_scalar_prefetch=0,
            grid=(b,),
            in_specs=[
                pl.BlockSpec((1, c, hw), lambda i: (i, 0, 0)),   # x
                pl.BlockSpec((c, 1), lambda i: (0, 0)),          # wq (column)
                pl.BlockSpec((c_half, c), lambda i: (0, 0)),     # Wv
                pl.BlockSpec((c_half, 1), lambda i: (0, 0)),     # bv
                pl.BlockSpec((c, c_half), lambda i: (0, 0)),     # Wz
                pl.BlockSpec((c, 1), lambda i: (0, 0)),          # bz
                pl.BlockSpec((c, 1), lambda i: (0, 0)),          # gamma
                pl.BlockSpec((c, 1), lambda i: (0, 0)),          # beta
            ],
            out_specs=pl.BlockSpec((1, c, hw), lambda i: (i, 0, 0)),
        ),
        compiler_params=pltpu.CompilerParams(
            dimension_semantics=("parallel",),
            vmem_limit_bytes=vmem_limit),
    )(x, wq_col, wv_m, bv_col, wz_m, bz_col, gamma_col, beta_col)

    # (b, c, hw) -> NCHW: free reshape.
    return out.reshape(b, c, h, w).astype(x_nchw.dtype)


def _reference(x_nchw, wv, bv, wq, bq, wz, bz, gamma, beta):
    """Pure-JAX reference mirroring the PyTorch forward exactly."""
    b, c, h, w = x_nchw.shape
    x = x_nchw.astype(jnp.float32)
    cwv = jnp.einsum('oc,bchw->bohw', wv.reshape(c // 2, c), x) + bv[None, :, None, None]
    cwq = jnp.einsum('oc,bchw->bohw', wq.reshape(1, c), x) + bq[None, :, None, None]
    cwv = cwv.reshape(b, c // 2, -1)
    cwq = cwq.reshape(b, -1, 1)
    cwq = jax.nn.softmax(cwq, axis=1)
    z = jnp.matmul(cwv, cwq)[..., None]                              # (b, c//2, 1, 1)
    wzv = jnp.einsum('oc,bchw->bohw', wz.reshape(c, c // 2), z) + bz[None, :, None, None]
    wzv = wzv.reshape(b, c, 1).transpose(0, 2, 1)                    # (b, 1, c)
    mu = jnp.mean(wzv, axis=-1, keepdims=True)
    var = jnp.mean((wzv - mu) ** 2, axis=-1, keepdims=True)
    ln = (wzv - mu) / jnp.sqrt(var + 1e-5) * gamma + beta
    weight = jax.nn.sigmoid(ln).transpose(0, 2, 1).reshape(b, c, 1, 1)
    return weight * x


if __name__ == "__main__":
    B, C, H, W = 2, 4, 16, 16
    key = jax.random.PRNGKey(0)
    kx, k1, k2, k3, k4, k5, k6 = jax.random.split(key, 7)

    x = jax.random.normal(kx, (B, C, H, W), dtype=jnp.float32)

    # Deterministic parameter init (conv weight shapes from nn.Conv2d, 1x1).
    wv = 0.1 * jax.random.normal(k1, (C // 2, C, 1, 1), dtype=jnp.float32)
    bv = 0.1 * jax.random.normal(k2, (C // 2,), dtype=jnp.float32)
    wq = 0.1 * jax.random.normal(k3, (1, C, 1, 1), dtype=jnp.float32)
    bq = 0.1 * jax.random.normal(k4, (1,), dtype=jnp.float32)
    wz = 0.1 * jax.random.normal(k5, (C, C // 2, 1, 1), dtype=jnp.float32)
    bz = 0.1 * jax.random.normal(k6, (C,), dtype=jnp.float32)
    gamma = jnp.ones((C,), dtype=jnp.float32)   # LayerNorm weight
    beta = jnp.zeros((C,), dtype=jnp.float32)   # LayerNorm bias

    out = channel_only_branch(x, wv, bv, wq, bq, wz, bz, gamma, beta)
    out = jax.block_until_ready(out)

    ref = _reference(x, wv, bv, wq, bq, wz, bz, gamma, beta)
    assert out.shape == (B, C, H, W)
    assert jnp.allclose(out, ref, rtol=1e-4, atol=1e-5), "mismatch vs reference"

    print("KERNEL_OK")
</pallas_src>

<mosaic_0001>
module attributes {stable_mosaic.version = 11 : i64} {
  func.func @_channel_only_kernel(%arg0: i32, %arg1: memref<1x4x256xf32, #tpu.memory_space<vmem>>, %arg2: memref<4x1xf32, #tpu.memory_space<vmem>>, %arg3: memref<2x4xf32, #tpu.memory_space<vmem>>, %arg4: memref<2x1xf32, #tpu.memory_space<vmem>>, %arg5: memref<4x2xf32, #tpu.memory_space<vmem>>, %arg6: memref<4x1xf32, #tpu.memory_space<vmem>>, %arg7: memref<4x1xf32, #tpu.memory_space<vmem>>, %arg8: memref<4x1xf32, #tpu.memory_space<vmem>>, %arg9: memref<1x4x256xf32, #tpu.memory_space<vmem>>) attributes {dimension_semantics = [#tpu.dimension_semantics<parallel>], iteration_bounds = array<i64: 2>, scalar_prefetch = 0 : i64, scratch_operands = 0 : i64, tpu.core_type = #tpu.core_type<tc>, window_params = [{transform_indices = @transform_0, window_bounds = array<i64: 1, 4, 256>}, {pipeline_mode = #tpu.pipeline_mode<synchronous>, transform_indices = @transform_1, window_bounds = array<i64: 4, 1>}, {pipeline_mode = #tpu.pipeline_mode<synchronous>, transform_indices = @transform_2, window_bounds = array<i64: 2, 4>}, {pipeline_mode = #tpu.pipeline_mode<synchronous>, transform_indices = @transform_3, window_bounds = array<i64: 2, 1>}, {pipeline_mode = #tpu.pipeline_mode<synchronous>, transform_indices = @transform_4, window_bounds = array<i64: 4, 2>}, {pipeline_mode = #tpu.pipeline_mode<synchronous>, transform_indices = @transform_5, window_bounds = array<i64: 4, 1>}, {pipeline_mode = #tpu.pipeline_mode<synchronous>, transform_indices = @transform_6, window_bounds = array<i64: 4, 1>}, {pipeline_mode = #tpu.pipeline_mode<synchronous>, transform_indices = @transform_7, window_bounds = array<i64: 4, 1>}, {transform_indices = @transform_8, window_bounds = array<i64: 1, 4, 256>}]} {
    %c0 = arith.constant 0 : index
    %c0_0 = arith.constant 0 : index
    %c0_1 = arith.constant 0 : index
    %0 = vector.load %arg1[%c0, %c0_0, %c0_1] : memref<1x4x256xf32, #tpu.memory_space<vmem>>, vector<1x4x256xf32>
    %1 = vector.shape_cast %0 : vector<1x4x256xf32> to vector<4x256xf32>
    %c0_2 = arith.constant 0 : index
    %c0_3 = arith.constant 0 : index
    %2 = vector.load %arg2[%c0_2, %c0_3] : memref<4x1xf32, #tpu.memory_space<vmem>>, vector<4x1xf32>
    %3 = vector.broadcast %2 : vector<4x1xf32> to vector<4x256xf32>
    %4 = arith.mulf %1, %3 : vector<4x256xf32>
    %cst = arith.constant dense<0.000000e+00> : vector<256xf32>
    %5 = vector.multi_reduction <add>, %4, %cst [0] : vector<4x256xf32> to vector<256xf32>
    %6 = vector.shape_cast %5 : vector<256xf32> to vector<1x256xf32>
    %cst_4 = arith.constant dense<0xFF800000> : vector<1xf32>
    %7 = vector.multi_reduction <maximumf>, %6, %cst_4 [1] : vector<1x256xf32> to vector<1xf32>
    %8 = vector.shape_cast %7 : vector<1xf32> to vector<1x1xf32>
    %9 = vector.broadcast %8 : vector<1x1xf32> to vector<1x256xf32>
    %10 = arith.subf %6, %9 : vector<1x256xf32>
    %11 = math.exp %10 : vector<1x256xf32>
    %cst_5 = arith.constant dense<0.000000e+00> : vector<1xf32>
    %12 = vector.multi_reduction <add>, %11, %cst_5 [1] : vector<1x256xf32> to vector<1xf32>
    %13 = vector.shape_cast %12 : vector<1xf32> to vector<1x1xf32>
    %14 = vector.broadcast %13 : vector<1x1xf32> to vector<1x256xf32>
    %15 = arith.divf %11, %14 : vector<1x256xf32>
    %16 = vector.broadcast %15 : vector<1x256xf32> to vector<4x256xf32>
    %17 = arith.mulf %1, %16 : vector<4x256xf32>
    %cst_6 = arith.constant dense<0.000000e+00> : vector<4xf32>
    %18 = vector.multi_reduction <add>, %17, %cst_6 [1] : vector<4x256xf32> to vector<4xf32>
    %19 = vector.shape_cast %18 : vector<4xf32> to vector<4x1xf32>
    %c0_7 = arith.constant 0 : index
    %c0_8 = arith.constant 0 : index
    %20 = vector.load %arg3[%c0_7, %c0_8] : memref<2x4xf32, #tpu.memory_space<vmem>>, vector<2x4xf32>
    %cst_9 = arith.constant dense<0.000000e+00> : vector<2x1xf32>
    %21 = tpu.matmul %20, %19, %cst_9 {dimension_numbers = #tpu.dot_dimension_numbers<[1], [0], [0], [1], [0, 0, 1, 1], [], []>} : vector<2x4xf32>, vector<4x1xf32>, vector<2x1xf32> -> vector<2x1xf32>
    %c0_10 = arith.constant 0 : index
    %c0_11 = arith.constant 0 : index
    %22 = vector.load %arg4[%c0_10, %c0_11] : memref<2x1xf32, #tpu.memory_space<vmem>>, vector<2x1xf32>
    %23 = arith.addf %21, %22 : vector<2x1xf32>
    %c0_12 = arith.constant 0 : index
    %c0_13 = arith.constant 0 : index
    %24 = vector.load %arg5[%c0_12, %c0_13] : memref<4x2xf32, #tpu.memory_space<vmem>>, vector<4x2xf32>
    %cst_14 = arith.constant dense<0.000000e+00> : vector<4x1xf32>
    %25 = tpu.matmul %24, %23, %cst_14 {dimension_numbers = #tpu.dot_dimension_numbers<[1], [0], [0], [1], [0, 0, 1, 1], [], []>} : vector<4x2xf32>, vector<2x1xf32>, vector<4x1xf32> -> vector<4x1xf32>
    %c0_15 = arith.constant 0 : index
    %c0_16 = arith.constant 0 : index
    %26 = vector.load %arg6[%c0_15, %c0_16] : memref<4x1xf32, #tpu.memory_space<vmem>>, vector<4x1xf32>
    %27 = arith.addf %25, %26 : vector<4x1xf32>
    %cst_17 = arith.constant dense<0.000000e+00> : vector<1xf32>
    %28 = vector.multi_reduction <add>, %27, %cst_17 [0] : vector<4x1xf32> to vector<1xf32>
    %29 = vector.shape_cast %28 : vector<1xf32> to vector<1x1xf32>
    %cst_18 = arith.constant 4.000000e+00 : f32
    %30 = vector.broadcast %cst_18 : f32 to vector<1x1xf32>
    %31 = arith.divf %29, %30 : vector<1x1xf32>
    %32 = vector.broadcast %31 : vector<1x1xf32> to vector<4x1xf32>
    %33 = arith.subf %27, %32 : vector<4x1xf32>
    %34 = arith.mulf %33, %33 : vector<4x1xf32>
    %cst_19 = arith.constant dense<0.000000e+00> : vector<1xf32>
    %35 = vector.multi_reduction <add>, %34, %cst_19 [0] : vector<4x1xf32> to vector<1xf32>
    %36 = vector.shape_cast %35 : vector<1xf32> to vector<1x1xf32>
    %cst_20 = arith.constant 4.000000e+00 : f32
    %37 = vector.broadcast %cst_20 : f32 to vector<1x1xf32>
    %38 = arith.divf %36, %37 : vector<1x1xf32>
    %39 = vector.broadcast %31 : vector<1x1xf32> to vector<4x1xf32>
    %40 = arith.subf %27, %39 : vector<4x1xf32>
    %cst_21 = arith.constant 9.99999974E-6 : f32
    %41 = vector.broadcast %cst_21 : f32 to vector<1x1xf32>
    %42 = arith.addf %38, %41 : vector<1x1xf32>
    %43 = math.rsqrt %42 : vector<1x1xf32>
    %44 = vector.broadcast %43 : vector<1x1xf32> to vector<4x1xf32>
    %45 = arith.mulf %40, %44 : vector<4x1xf32>
    %c0_22 = arith.constant 0 : index
    %c0_23 = arith.constant 0 : index
    %46 = vector.load %arg7[%c0_22, %c0_23] : memref<4x1xf32, #tpu.memory_space<vmem>>, vector<4x1xf32>
    %47 = arith.mulf %45, %46 : vector<4x1xf32>
    %c0_24 = arith.constant 0 : index
    %c0_25 = arith.constant 0 : index
    %48 = vector.load %arg8[%c0_24, %c0_25] : memref<4x1xf32, #tpu.memory_space<vmem>>, vector<4x1xf32>
    %49 = arith.addf %47, %48 : vector<4x1xf32>
    %50 = arith.negf %49 : vector<4x1xf32>
    %51 = math.exp %50 : vector<4x1xf32>
    %cst_26 = arith.constant 1.000000e+00 : f32
    %52 = vector.broadcast %cst_26 : f32 to vector<4x1xf32>
    %53 = arith.addf %52, %51 : vector<4x1xf32>
    %54 = arith.divf %52, %53 : vector<4x1xf32>
    %55 = vector.broadcast %54 : vector<4x1xf32> to vector<4x256xf32>
    %56 = arith.mulf %1, %55 : vector<4x256xf32>
    %c0_27 = arith.constant 0 : index
    %c0_28 = arith.constant 0 : index
    %c0_29 = arith.constant 0 : index
    %57 = vector.load %arg9[%c0_27, %c0_28, %c0_29] : memref<1x4x256xf32, #tpu.memory_space<vmem>>, vector<1x4x256xf32>
    %58 = vector.shape_cast %57 : vector<1x4x256xf32> to vector<4x256xf32>
    %59 = vector.shape_cast %56 : vector<4x256xf32> to vector<1x4x256xf32>
    tpu.vector_store %arg9[%c0_27, %c0_28, %c0_29], %59 {strides = array<i32>} : memref<1x4x256xf32, #tpu.memory_space<vmem>>, vector<1x4x256xf32>,
    return
  }
  func.func @transform_0(%arg0: i32) -> (i32, i32, i32) {
    %c0_i32 = arith.constant 0 : i32
    %c0_i32_0 = arith.constant 0 : i32
    %c0_i32_1 = arith.constant 0 : i32
    return %arg0, %c0_i32, %c0_i32_0 : i32, i32, i32
  }
  func.func @transform_1(%arg0: i32) -> (i32, i32) {
    %c0_i32 = arith.constant 0 : i32
    %c0_i32_0 = arith.constant 0 : i32
    %c0_i32_1 = arith.constant 0 : i32
    return %c0_i32, %c0_i32_0 : i32, i32
  }
  func.func @transform_2(%arg0: i32) -> (i32, i32) {
    %c0_i32 = arith.constant 0 : i32
    %c0_i32_0 = arith.constant 0 : i32
    %c0_i32_1 = arith.constant 0 : i32
    return %c0_i32, %c0_i32_0 : i32, i32
  }
  func.func @transform_3(%arg0: i32) -> (i32, i32) {
    %c0_i32 = arith.constant 0 : i32
    %c0_i32_0 = arith.constant 0 : i32
    %c0_i32_1 = arith.constant 0 : i32
    return %c0_i32, %c0_i32_0 : i32, i32
  }
  func.func @transform_4(%arg0: i32) -> (i32, i32) {
    %c0_i32 = arith.constant 0 : i32
    %c0_i32_0 = arith.constant 0 : i32
    %c0_i32_1 = arith.constant 0 : i32
    return %c0_i32, %c0_i32_0 : i32, i32
  }
  func.func @transform_5(%arg0: i32) -> (i32, i32) {
    %c0_i32 = arith.constant 0 : i32
    %c0_i32_0 = arith.constant 0 : i32
    %c0_i32_1 = arith.constant 0 : i32
    return %c0_i32, %c0_i32_0 : i32, i32
  }
  func.func @transform_6(%arg0: i32) -> (i32, i32) {
    %c0_i32 = arith.constant 0 : i32
    %c0_i32_0 = arith.constant 0 : i32
    %c0_i32_1 = arith.constant 0 : i32
    return %c0_i32, %c0_i32_0 : i32, i32
  }
  func.func @transform_7(%arg0: i32) -> (i32, i32) {
    %c0_i32 = arith.constant 0 : i32
    %c0_i32_0 = arith.constant 0 : i32
    %c0_i32_1 = arith.constant 0 : i32
    return %c0_i32, %c0_i32_0 : i32, i32
  }
  func.func @transform_8(%arg0: i32) -> (i32, i32, i32) {
    %c0_i32 = arith.constant 0 : i32
    %c0_i32_0 = arith.constant 0 : i32
    %c0_i32_1 = arith.constant 0 : i32
    return %arg0, %c0_i32, %c0_i32_0 : i32, i32, i32
  }
}

</mosaic_0001>

<llo_original>
// kernel: channel_only_branch.1
$region0: #{channel_only_branch.1}
  #allocation0 [shape = 'u32[]', space=smem, size = 0x4, offset = 0x4, fixed_abs, tag = 'smem constant byte address 0x4 - core index']
  #allocation1 [shape = 'u32[144,128]{1,0:T(1,128)}', space=vmem, size = 0x12000, scoped, tag = 'internal scratch']
  %s0 = inlined_call_operand.vmem [shape: f32[2,4,256], index: 0, kind: input, shape index: {}]
  %s1 = inlined_call_operand.vmem [shape: f32[4,1], index: 1, kind: input, shape index: {}]
  %s2 = inlined_call_operand.vmem [shape: f32[2,4], index: 2, kind: input, shape index: {}]
  %s3 = inlined_call_operand.vmem [shape: f32[2,1], index: 3, kind: input, shape index: {}]
  %s4 = inlined_call_operand.vmem [shape: f32[4,2], index: 4, kind: input, shape index: {}]
  %s5 = inlined_call_operand.vmem [shape: f32[4,1], index: 5, kind: input, shape index: {}]
  %s6 = inlined_call_operand.vmem [shape: f32[4,1], index: 6, kind: input, shape index: {}]
  %s7 = inlined_call_operand.vmem [shape: f32[4,1], index: 7, kind: input, shape index: {}]
  %s8 = inlined_call_operand.vmem [shape: f32[2,4,256], index: 8, kind: output, shape index: {}]
  %s9 = sld [smem:[#allocation0]]
  $region65: #{channel_only_branch.1} parent=0
    _
  %s11 = ssub.s32 1, %s9
  %s12 = scalar_select 0, %s11, %s9
  loop: start=0, step=1, limit=4
  $region2: #{channel_only_branch.1} parent=0 // loop_pre_header
    _
  $region3: #{channel_only_branch.1} parent=0 // loop_header
    %s14 = sphi 0, %s18
    %p15 = scmp.ge.s32.totalorder %s14, 4
    %s24 = sphi 0, %s26
    %s27 = sphi 0, %s24
    %s28 = sphi 0, %s27
    %s44 = sphi 0, %s28
    %s48 = sphi 0, %s48
    %s50 = sphi 0, %s48
    %s51 = sphi 0, %s50
    %s65 = sphi 0, %s51
    %s69 = sphi 0, %s69
    %s71 = sphi 0, %s69
    %s72 = sphi 0, %s71
    %s86 = sphi 0, %s72
    %s90 = sphi 0, %s90
    %s92 = sphi 0, %s90
    %s93 = sphi 0, %s92
    %s107 = sphi 0, %s93
    %s111 = sphi 0, %s111
    %s113 = sphi 0, %s111
    %s114 = sphi 0, %s113
    %s128 = sphi 0, %s114
    %s132 = sphi 0, %s132
    %s134 = sphi 0, %s132
    %s135 = sphi 0, %s134
    %s149 = sphi 0, %s135
    %s153 = sphi 0, %s153
    %s155 = sphi 0, %s153
    %s156 = sphi 0, %s155
    %s170 = sphi 0, %s156
    %s174 = sphi 0, %s174
    %s176 = sphi 0, %s174
    %s177 = sphi 0, %s176
    %s191 = sphi 0, %s177
    %s197 = sphi 0, %s199
    %s200 = sphi 0, %s197
    %s201 = sphi 0, %s200
    %s217 = sphi 0, %s201
  $region4: #{channel_only_branch.1} parent=0 // loop_header_branch
    %17 = sbr.rel (%p15) target = $region8
  $region5: #{channel_only_branch.1} parent=0 // loop_body
    %s19 = ssub.s32 %s14, 1
    %s20 = ssub.s32 %s14, 2
    %s21 = sadd.s32 %s14, 1
    %s22 = ssub.s32 %s14, %s21
    %p23 = scmp.eq.s32.totalorder %s22, 0
    %s25 = sadd.s32 %s24, 1
    %s26 = scalar_select %p23, %s24, %s25
    %p29 = pneg %p23
    %p30 = scmp.eq.s32.totalorder %s14, 1
    %p31 = por %p29, %p30
    %p32 = scmp.ne.s32.totalorder %s24, %s27
    %p33 = scmp.eq.s32.totalorder %s14, 0
    %p34 = por %p32, %p33
    %p35 = scmp.ne.s32.totalorder %s24, %s27
    %p36 = scmp.eq.s32.totalorder %s19, 1
    %p37 = por %p35, %p36
    %p38 = scmp.ne.s32.totalorder %s27, %s28
    %p39 = scmp.eq.s32.totalorder %s19, 0
    %p40 = por %p38, %p39
    %p41 = scmp.ne.s32.totalorder %s27, %s28
    %p42 = scmp.eq.s32.totalorder %s20, 1
    %p43 = por %p41, %p42
    %p45 = scmp.ne.s32.totalorder %s28, %s44
    %p46 = scmp.eq.s32.totalorder %s20, 0
    %p47 = por %p45, %p46
    %s49 = sadd.s32 %s48, 1
    %p52 = scmp.eq.s32.totalorder %s14, 1
    %p53 = scmp.ne.s32.totalorder %s48, %s50
    %p54 = scmp.eq.s32.totalorder %s14, 0
    %p55 = por %p53, %p54
    %p56 = scmp.ne.s32.totalorder %s48, %s50
    %p57 = scmp.eq.s32.totalorder %s19, 1
    %p58 = por %p56, %p57
    %p59 = scmp.ne.s32.totalorder %s50, %s51
    %p60 = scmp.eq.s32.totalorder %s19, 0
    %p61 = por %p59, %p60
    %p62 = scmp.ne.s32.totalorder %s50, %s51
    %p63 = scmp.eq.s32.totalorder %s20, 1
    %p64 = por %p62, %p63
    %p66 = scmp.ne.s32.totalorder %s51, %s65
    %p67 = scmp.eq.s32.totalorder %s20, 0
    %p68 = por %p66, %p67
    %s70 = sadd.s32 %s69, 1
    %p73 = scmp.eq.s32.totalorder %s14, 1
    %p74 = scmp.ne.s32.totalorder %s69, %s71
    %p75 = scmp.eq.s32.totalorder %s14, 0
    %p76 = por %p74, %p75
    %p77 = scmp.ne.s32.totalorder %s69, %s71
    %p78 = scmp.eq.s32.totalorder %s19, 1
    %p79 = por %p77, %p78
    %p80 = scmp.ne.s32.totalorder %s71, %s72
    %p81 = scmp.eq.s32.totalorder %s19, 0
    %p82 = por %p80, %p81
    %p83 = scmp.ne.s32.totalorder %s71, %s72
    %p84 = scmp.eq.s32.totalorder %s20, 1
    %p85 = por %p83, %p84
    %p87 = scmp.ne.s32.totalorder %s72, %s86
    %p88 = scmp.eq.s32.totalorder %s20, 0
    %p89 = por %p87, %p88
    %s91 = sadd.s32 %s90, 1
    %p94 = scmp.eq.s32.totalorder %s14, 1
    %p95 = scmp.ne.s32.totalorder %s90, %s92
    %p96 = scmp.eq.s32.totalorder %s14, 0
    %p97 = por %p95, %p96
    %p98 = scmp.ne.s32.totalorder %s90, %s92
    %p99 = scmp.eq.s32.totalorder %s19, 1
    %p100 = por %p98, %p99
    %p101 = scmp.ne.s32.totalorder %s92, %s93
    %p102 = scmp.eq.s32.totalorder %s19, 0
    %p103 = por %p101, %p102
    %p104 = scmp.ne.s32.totalorder %s92, %s93
    %p105 = scmp.eq.s32.totalorder %s20, 1
    %p106 = por %p104, %p105
    %p108 = scmp.ne.s32.totalorder %s93, %s107
    %p109 = scmp.eq.s32.totalorder %s20, 0
    %p110 = por %p108, %p109
    %s112 = sadd.s32 %s111, 1
    %p115 = scmp.eq.s32.totalorder %s14, 1
    %p116 = scmp.ne.s32.totalorder %s111, %s113
    %p117 = scmp.eq.s32.totalorder %s14, 0
    %p118 = por %p116, %p117
    %p119 = scmp.ne.s32.totalorder %s111, %s113
    %p120 = scmp.eq.s32.totalorder %s19, 1
    %p121 = por %p119, %p120
    %p122 = scmp.ne.s32.totalorder %s113, %s114
    %p123 = scmp.eq.s32.totalorder %s19, 0
    %p124 = por %p122, %p123
    %p125 = scmp.ne.s32.totalorder %s113, %s114
    %p126 = scmp.eq.s32.totalorder %s20, 1
    %p127 = por %p125, %p126
    %p129 = scmp.ne.s32.totalorder %s114, %s128
    %p130 = scmp.eq.s32.totalorder %s20, 0
    %p131 = por %p129, %p130
    %s133 = sadd.s32 %s132, 1
    %p136 = scmp.eq.s32.totalorder %s14, 1
    %p137 = scmp.ne.s32.totalorder %s132, %s134
    %p138 = scmp.eq.s32.totalorder %s14, 0
    %p139 = por %p137, %p138
    %p140 = scmp.ne.s32.totalorder %s132, %s134
    %p141 = scmp.eq.s32.totalorder %s19, 1
    %p142 = por %p140, %p141
    %p143 = scmp.ne.s32.totalorder %s134, %s135
    %p144 = scmp.eq.s32.totalorder %s19, 0
    %p145 = por %p143, %p144
    %p146 = scmp.ne.s32.totalorder %s134, %s135
    %p147 = scmp.eq.s32.totalorder %s20, 1
    %p148 = por %p146, %p147
    %p150 = scmp.ne.s32.totalorder %s135, %s149
    %p151 = scmp.eq.s32.totalorder %s20, 0
    %p152 = por %p150, %p151
    %s154 = sadd.s32 %s153, 1
    %p157 = scmp.eq.s32.totalorder %s14, 1
    %p158 = scmp.ne.s32.totalorder %s153, %s155
    %p159 = scmp.eq.s32.totalorder %s14, 0
    %p160 = por %p158, %p159
    %p161 = scmp.ne.s32.totalorder %s153, %s155
    %p162 = scmp.eq.s32.totalorder %s19, 1
    %p163 = por %p161, %p162
    %p164 = scmp.ne.s32.totalorder %s155, %s156
    %p165 = scmp.eq.s32.totalorder %s19, 0
    %p166 = por %p164, %p165
    %p167 = scmp.ne.s32.totalorder %s155, %s156
    %p168 = scmp.eq.s32.totalorder %s20, 1
    %p169 = por %p167, %p168
    %p171 = scmp.ne.s32.totalorder %s156, %s170
    %p172 = scmp.eq.s32.totalorder %s20, 0
    %p173 = por %p171, %p172
    %s175 = sadd.s32 %s174, 1
    %p178 = scmp.eq.s32.totalorder %s14, 1
    %p179 = scmp.ne.s32.totalorder %s174, %s176
    %p180 = scmp.eq.s32.totalorder %s14, 0
    %p181 = por %p179, %p180
    %p182 = scmp.ne.s32.totalorder %s174, %s176
    %p183 = scmp.eq.s32.totalorder %s19, 1
    %p184 = por %p182, %p183
    %p185 = scmp.ne.s32.totalorder %s176, %s177
    %p186 = scmp.eq.s32.totalorder %s19, 0
    %p187 = por %p185, %p186
    %p188 = scmp.ne.s32.totalorder %s176, %s177
    %p189 = scmp.eq.s32.totalorder %s20, 1
    %p190 = por %p188, %p189
    %p192 = scmp.ne.s32.totalorder %s177, %s191
    %p193 = scmp.eq.s32.totalorder %s20, 0
    %p194 = por %p192, %p193
    %s195 = ssub.s32 %s14, %s21
    %p196 = scmp.eq.s32.totalorder %s195, 0
    %s198 = sadd.s32 %s197, 1
    %s199 = scalar_select %p196, %s197, %s198
    %p202 = pneg %p196
    %p203 = scmp.eq.s32.totalorder %s14, 1
    %p204 = por %p202, %p203
    %p205 = scmp.ne.s32.totalorder %s197, %s200
    %p206 = scmp.eq.s32.totalorder %s14, 0
    %p207 = por %p205, %p206
    %p208 = scmp.ne.s32.totalorder %s197, %s200
    %p209 = scmp.eq.s32.totalorder %s19, 1
    %p210 = por %p208, %p209
    %p211 = scmp.ne.s32.totalorder %s200, %s201
    %p212 = scmp.eq.s32.totalorder %s19, 0
    %p213 = por %p211, %p212
    %p214 = scmp.ne.s32.totalorder %s200, %s201
    %p215 = scmp.eq.s32.totalorder %s20, 1
    %p216 = por %p214, %p215
    %p218 = scmp.ne.s32.totalorder %s201, %s217
    %p219 = scmp.eq.s32.totalorder %s20, 0
    %p220 = por %p218, %p219
    %p221 = scmp.le.s32.totalorder 1, %s14
    %p222 = scmp.lt.s32.totalorder %s14, 3
    %p223 = pnand %p221, %p222
    %p224 = pneg %p223
    // Predicated region
    $region9: #{channel_only_branch.1} parent=5 // pred_check
      _
    $region10: #{channel_only_branch.1} parent=5 // pred_check_branch
      %226 = sbr.rel (%p223) target = $region12
    $region11: #{channel_only_branch.1} parent=5 // pred_region
      %s227 = ssub.s32 %s14, 1
      // Predicated region
      $region13: #{channel_only_branch.1} parent=11 // pred_check
        %p228 = pneg %p61
      $region14: #{channel_only_branch.1} parent=11 // pred_check_branch
        %230 = sbr.rel (%p228) target = $region16
      $region15: #{channel_only_branch.1} parent=11 // pred_region
        _
      $region16: #{channel_only_branch.1} parent=11 // pred_fallthru
        _
      // Predicated region
      $region17: #{channel_only_branch.1} parent=11 // pred_check
        %p231 = pneg %p82
      $region18: #{channel_only_branch.1} parent=11 // pred_check_branch
        %233 = sbr.rel (%p231) target = $region20
      $region19: #{channel_only_branch.1} parent=11 // pred_region
        _
      $region20: #{channel_only_branch.1} parent=11 // pred_fallthru
        _
      // Predicated region
      $region21: #{channel_only_branch.1} parent=11 // pred_check
        %p234 = pneg %p103
      $region22: #{channel_only_branch.1} parent=11 // pred_check_branch
        %236 = sbr.rel (%p234) target = $region24
      $region23: #{channel_only_branch.1} parent=11 // pred_region
        _
      $region24: #{channel_only_branch.1} parent=11 // pred_fallthru
        _
      // Predicated region
      $region25: #{channel_only_branch.1} parent=11 // pred_check
        %p237 = pneg %p124
      $region26: #{channel_only_branch.1} parent=11 // pred_check_branch
        %239 = sbr.rel (%p237) target = $region28
      $region27: #{channel_only_branch.1} parent=11 // pred_region
        _
      $region28: #{channel_only_branch.1} parent=11 // pred_fallthru
        _
      // Predicated region
      $region29: #{channel_only_branch.1} parent=11 // pred_check
        %p240 = pneg %p145
      $region30: #{channel_only_branch.1} parent=11 // pred_check_branch
        %242 = sbr.rel (%p240) target = $region32
      $region31: #{channel_only_branch.1} parent=11 // pred_region
        _
      $region32: #{channel_only_branch.1} parent=11 // pred_fallthru
        _
      // Predicated region
      $region33: #{channel_only_branch.1} parent=11 // pred_check
        %p243 = pneg %p166
      $region34: #{channel_only_branch.1} parent=11 // pred_check_branch
        %245 = sbr.rel (%p243) target = $region36
      $region35: #{channel_only_branch.1} parent=11 // pred_region
        _
      $region36: #{channel_only_branch.1} parent=11 // pred_fallthru
        _
      // Predicated region
      $region37: #{channel_only_branch.1} parent=11 // pred_check
        %p246 = pneg %p187
      $region38: #{channel_only_branch.1} parent=11 // pred_check_branch
        %248 = sbr.rel (%p246) target = $region40
      $region39: #{channel_only_branch.1} parent=11 // pred_region
        _
      $region40: #{channel_only_branch.1} parent=11 // pred_fallthru
        _
    $region12: #{channel_only_branch.1} parent=5 // pred_fallthru
      _
    %p249 = scmp.lt.s32.totalorder %s14, 2
    // Predicated region
    $region41: #{channel_only_branch.1} parent=5 // pred_check
      %p250 = pneg %p249
    $region42: #{channel_only_branch.1} parent=5 // pred_check_branch
      %252 = sbr.rel (%p250) target = $region44
    $region43: #{channel_only_branch.1} parent=5 // pred_region
      // Predicated region
      $region45: #{channel_only_branch.1} parent=43 // pred_check
        %p253 = pneg %p34
      $region46: #{channel_only_branch.1} parent=43 // pred_check_branch
        %255 = sbr.rel (%p253) target = $region48
      $region47: #{channel_only_branch.1} parent=43 // pred_region
        %p256 = scmp.lt.s32.totalorder %s14, 1
        %s257 = scalar_select %p256, %s14, 1
        %s258 = smul.addr %s257, 2
        %s259 = smul.addr %s258, 4
        %s260 = scalar_lea.vmem %s0, %s259
      $region48: #{channel_only_branch.1} parent=43 // pred_fallthru
        _
    $region44: #{channel_only_branch.1} parent=5 // pred_fallthru
      _
    %p261 = scmp.le.s32.totalorder 1, %s14
    %p262 = scmp.lt.s32.totalorder %s14, 3
    %p263 = pnand %p261, %p262
    %p264 = pneg %p263
    // Predicated region
    $region49: #{channel_only_branch.1} parent=5 // pred_check
      _
    $region50: #{channel_only_branch.1} parent=5 // pred_check_branch
      %266 = sbr.rel (%p263) target = $region52
    $region51: #{channel_only_branch.1} parent=5 // pred_region
      %s267 = ssub.s32 %s14, 1
      %p268 = scmp.lt.s32.totalorder %s19, 1
      %s269 = scalar_select %p268, %s19, 1
      %s270 = smul.addr %s269, 2
      %s271 = smul.addr %s270, 4
      %s272 = scalar_lea.vmem %s0, %s271
      %p273 = pneg %p40
      %p274 = pneg %p37
      %p275 = pneg %p61
      %p276 = pneg %p58
      %p277 = pneg %p82
      %p278 = pneg %p79
      %p279 = pneg %p103
      %p280 = pneg %p100
      %p281 = pneg %p124
      %p282 = pneg %p121
      %p283 = pneg %p145
      %p284 = pneg %p142
      %p285 = pneg %p166
      %p286 = pneg %p163
      %p287 = pneg %p187
      %p288 = pneg %p184
      %p289 = pneg %p213
      %p290 = pneg %p210
      %p291 = scmp.lt.s32.totalorder %s19, 1
      %s292 = scalar_select %p291, %s19, 1
      %s293 = smul.addr %s292, 2
      %s294 = smul.addr %s293, 4
      %s295 = scalar_lea.vmem %s8, %s294
      %p296 = scmp.lt.s32.totalorder %s19, 1
      %s297 = scalar_select %p296, %s19, 1
      %s298 = smul.addr %s297, 2
      %s299 = smul.addr %s298, 4
      %s300 = scalar_lea.vmem %s0, %s299
      %p301 = scmp.lt.s32.totalorder %s19, 1
      %s302 = scalar_select %p301, %s19, 1
      %s303 = smul.addr %s302, 2
      %s304 = smul.addr %s303, 4
      %s305 = scalar_lea.vmem %s8, %s304
      %v306 = vld [vmem:[%s300] sm:$0xff]
      %v307 = vld [vmem:[%s1] sm:$0xf]
      %309 = vset.pattern.permute.xlu0 0
      %310 = vperm.xlu0 %309, %v307
      %v311 = vpop.permute.xlu0 %310
      %v313 = vunpack.c.l.s4 839922192
      %v314 = vunpack.c.0.s8 %v313
      %v315 = vlaneseq
      %v316 = vshrl.u32 %v315, 7
      %v317 = vsub.s32 %v314, %v316
      %v318 = vrot.slane %v311, %v317
      %v320 = vmul.f32 %v306, %v318
      %v322 = vcombine.high %v320, %v320
      %vm324 = vcmask 1043456
      %v325 = vsel %vm324, %v320, 0.0
      %v326 = vrot.slane %v325, 4
      %v327 = vadd.f32 %v325, %v326
      %v328 = vrot.slane %v327, 2
      %v329 = vadd.f32 %v327, %v328
      %v330 = vrot.slane %v329, 1
      %v331 = vadd.f32 %v329, %v330
      %v332 = vsel %vm324, %v322, 0.0
      %v333 = vrot.slane %v332, 4
      %v334 = vadd.f32 %v332, %v333
      %v335 = vrot.slane %v334, 2
      %v336 = vadd.f32 %v334, %v335
      %v337 = vrot.slane %v336, 1
      %v338 = vadd.f32 %v336, %v337
      %v339 = vmax.f32 %v331, %v338
      %340 = vmax.xlane.f32.xlu0 %v339
      %v341 = vpop.xlane.xlu0 %340
      %v342 = vsub.f32 %v331, %v341
      %v343 = vsub.f32 %v338, %v341
      %v344 = vmul.f32 %v342, 1.442695
      %v345 = vpow.pop %v344
      %v346 = vmul.f32 %v343, 1.442695
      %v347 = vpow.pop %v346
      %v348 = vadd.f32 %v345, %v347
      %349 = vadd.xlane.f32.xlu0 %v348
      %v350 = vpop.xlane.xlu0 %349
      %v351 = vrcp.pop %v350
      %v352 = vmul.f32 %v345, %v351
      %v353 = vmul.f32 %v347, %v351
      %v356 = vcombine.low %v352, %v353
      %v358 = vmul.f32 %v306, %v356
      %v360 = vcombine.high %v358, %v358
      %v362 = vsel %vm324, %v358, 0.0
      %v363 = vsel %vm324, %v360, 0.0
      %v364 = vadd.f32 %v362, %v363
      %365 = vadd.xlane.f32.xlu0 %v364
      %v366 = vpop.xlane.xlu0 %365
      %v367 = vld [vmem:[%s2] sm:$0x3]
      %v368 = vld [vmem:[%s3] sm:$0x3]
      %vm369 = vcmask 31744
      %v371 = vsel %vm369, %v367, 0
      %v374 = vsel %vm324, %v366, 0
      %376 = vmatprep.subr.mxu0 0.0
      %377 = vmatpush1.msra.mxu0 %v374
      %378 = vmatprep.subr.mxu0 0.0
      %379 = vmatpush1.msra.mxu0 0.0
      %380 = vmatprep.subr.mxu0 0.0
      %381 = vmatpush1.msra.mxu0 0.0
      %382 = vmatprep.subr.mxu0 0.0
      %383 = vmatpush1.msra.mxu0 0.0
      %384 = vmatprep.subr.mxu0 0.0
      %385 = vmatpush1.msra.mxu0 0.0
      %386 = vmatprep.subr.mxu0 0.0
      %387 = vmatpush1.msra.mxu0 0.0
      %388 = vmatprep.subr.mxu0 0.0
      %389 = vmatpush1.msra.mxu0 0.0
      %390 = vmatprep.subr.mxu0 0.0
      %391 = vmatpush1.msra.mxu0 0.0
      %392 = vmatprep.subr.mxu0 0.0
      %393 = vmatpush1.msra.mxu0 0.0
      %394 = vmatprep.subr.mxu0 0.0
      %395 = vmatpush1.msra.mxu0 0.0
      %396 = vmatprep.subr.mxu0 0.0
      %397 = vmatpush1.msra.mxu0 0.0
      %398 = vmatprep.subr.mxu0 0.0
      %399 = vmatpush1.msra.mxu0 0.0
      %400 = vmatprep.subr.mxu0 0.0
      %401 = vmatpush1.msra.mxu0 0.0
      %402 = vmatprep.subr.mxu0 0.0
      %403 = vmatpush1.msra.mxu0 0.0
      %404 = vmatprep.subr.mxu0 0.0
      %405 = vmatpush1.msra.mxu0 0.0
      %406 = vmatprep.subr.mxu0 0.0
      %407 = vmatpush1.msra.mxu0 0.0
      %408 = vmatprep.subr.mxu0 0.0
      %409 = vmatpush1.msra.mxu0 0.0
      %410 = vmatprep.subr.mxu0 0.0
      %411 = vmatpush1.msra.mxu0 0.0
      %412 = vmatprep.subr.mxu0 0.0
      %413 = vmatpush1.msra.mxu0 0.0
      %414 = vmatprep.subr.mxu0 0.0
      %415 = vmatpush1.msra.mxu0 0.0
      %416 = vmatprep.subr.mxu0 0.0
      %417 = vmatpush1.msra.mxu0 0.0
      %418 = vmatprep.subr.mxu0 0.0
      %419 = vmatpush1.msra.mxu0 0.0
      %420 = vmatprep.subr.mxu0 0.0
      %421 = vmatpush1.msra.mxu0 0.0
      %422 = vmatprep.subr.mxu0 0.0
      %423 = vmatpush1.msra.mxu0 0.0
      %424 = vmatprep.subr.mxu0 0.0
      %425 = vmatpush1.msra.mxu0 0.0
      %426 = vmatprep.subr.mxu0 0.0
      %427 = vmatpush1.msra.mxu0 0.0
      %428 = vmatprep.subr.mxu0 0.0
      %429 = vmatpush1.msra.mxu0 0.0
      %430 = vmatprep.subr.mxu0 0.0
      %431 = vmatpush1.msra.mxu0 0.0
      %432 = vmatprep.subr.mxu0 0.0
      %433 = vmatpush1.msra.mxu0 0.0
      %434 = vmatprep.subr.mxu0 0.0
      %435 = vmatpush1.msra.mxu0 0.0
      %436 = vmatprep.subr.mxu0 0.0
      %437 = vmatpush1.msra.mxu0 0.0
      %438 = vmatprep.subr.mxu0 0.0
      %439 = vmatpush1.msra.mxu0 0.0
      %440 = vmatprep.mubr.f32.mxu0 0.0
      %441 = vmatmul.mubr.f32.gmra.mrb[0].mxu0 %v371
      %v442 = vpop.f32.mrb[0].mxu0
      %v443 = vadd.f32 %v368, %v442
      %v444 = vpop.f32.mrb[0].mxu0
      %445 = vdwg.mxu0
      %v446 = vld [vmem:[%s4] sm:$0xf]
      %v447 = vld [vmem:[%s5] sm:$0xf]
      %vm448 = vcmask 15360
      %v450 = vsel %vm448, %v446, 0
      %vm452 = vcmask 1041408
      %v454 = vsel %vm452, %v443, 0
      %456 = vmatprep.subr.mxu0 0.0
      %457 = vmatpush1.msra.mxu0 %v454
      %458 = vmatprep.subr.mxu0 0.0
      %459 = vmatpush1.msra.mxu0 0.0
      %460 = vmatprep.subr.mxu0 0.0
      %461 = vmatpush1.msra.mxu0 0.0
      %462 = vmatprep.subr.mxu0 0.0
      %463 = vmatpush1.msra.mxu0 0.0
      %464 = vmatprep.subr.mxu0 0.0
      %465 = vmatpush1.msra.mxu0 0.0
      %466 = vmatprep.subr.mxu0 0.0
      %467 = vmatpush1.msra.mxu0 0.0
      %468 = vmatprep.subr.mxu0 0.0
      %469 = vmatpush1.msra.mxu0 0.0
      %470 = vmatprep.subr.mxu0 0.0
      %471 = vmatpush1.msra.mxu0 0.0
      %472 = vmatprep.subr.mxu0 0.0
      %473 = vmatpush1.msra.mxu0 0.0
      %474 = vmatprep.subr.mxu0 0.0
      %475 = vmatpush1.msra.mxu0 0.0
      %476 = vmatprep.subr.mxu0 0.0
      %477 = vmatpush1.msra.mxu0 0.0
      %478 = vmatprep.subr.mxu0 0.0
      %479 = vmatpush1.msra.mxu0 0.0
      %480 = vmatprep.subr.mxu0 0.0
      %481 = vmatpush1.msra.mxu0 0.0
      %482 = vmatprep.subr.mxu0 0.0
      %483 = vmatpush1.msra.mxu0 0.0
      %484 = vmatprep.subr.mxu0 0.0
      %485 = vmatpush1.msra.mxu0 0.0
      %486 = vmatprep.subr.mxu0 0.0
      %487 = vmatpush1.msra.mxu0 0.0
      %488 = vmatprep.subr.mxu0 0.0
      %489 = vmatpush1.msra.mxu0 0.0
      %490 = vmatprep.subr.mxu0 0.0
      %491 = vmatpush1.msra.mxu0 0.0
      %492 = vmatprep.subr.mxu0 0.0
      %493 = vmatpush1.msra.mxu0 0.0
      %494 = vmatprep.subr.mxu0 0.0
      %495 = vmatpush1.msra.mxu0 0.0
      %496 = vmatprep.subr.mxu0 0.0
      %497 = vmatpush1.msra.mxu0 0.0
      %498 = vmatprep.subr.mxu0 0.0
      %499 = vmatpush1.msra.mxu0 0.0
      %500 = vmatprep.subr.mxu0 0.0
      %501 = vmatpush1.msra.mxu0 0.0
      %502 = vmatprep.subr.mxu0 0.0
      %503 = vmatpush1.msra.mxu0 0.0
      %504 = vmatprep.subr.mxu0 0.0
      %505 = vmatpush1.msra.mxu0 0.0
      %506 = vmatprep.subr.mxu0 0.0
      %507 = vmatpush1.msra.mxu0 0.0
      %508 = vmatprep.subr.mxu0 0.0
      %509 = vmatpush1.msra.mxu0 0.0
      %510 = vmatprep.subr.mxu0 0.0
      %511 = vmatpush1.msra.mxu0 0.0
      %512 = vmatprep.subr.mxu0 0.0
      %513 = vmatpush1.msra.mxu0 0.0
      %514 = vmatprep.subr.mxu0 0.0
      %515 = vmatpush1.msra.mxu0 0.0
      %516 = vmatprep.subr.mxu0 0.0
      %517 = vmatpush1.msra.mxu0 0.0
      %518 = vmatprep.subr.mxu0 0.0
      %519 = vmatpush1.msra.mxu0 0.0
      %520 = vmatprep.mubr.f32.mxu0 0.0
      %521 = vmatmul.mubr.f32.gmra.mrb[0].mxu0 %v450
      %v522 = vpop.f32.mrb[0].mxu0
      %v523 = vadd.f32 %v447, %v522
      %v524 = vpop.f32.mrb[0].mxu0
      %525 = vdwg.mxu0
      %vm526 = vcmask 3072
      %v527 = vsel %vm526, %v523, 0.0
      %v528 = vrot.slane %v527, 4
      %v529 = vadd.f32 %v527, %v528
      %v530 = vrot.slane %v529, 2
      %v531 = vadd.f32 %v529, %v530
      %v532 = vrot.slane %v531, 1
      %v533 = vadd.f32 %v531, %v532
      %v534 = vrcp.pop 4.0
      %v535 = vmul.f32 %v533, %v534
      %v536 = vsub.f32 %v523, %v535
      %v537 = vmul.f32 %v536, %v536
      %v538 = vsel %vm526, %v537, 0.0
      %v539 = vrot.slane %v538, 4
      %v540 = vadd.f32 %v538, %v539
      %v541 = vrot.slane %v540, 2
      %v542 = vadd.f32 %v540, %v541
      %v543 = vrot.slane %v542, 1
      %v544 = vadd.f32 %v542, %v543
      %v545 = vmul.f32 %v544, %v534
      %v546 = vadd.f32 %v545, 1e-05
      %v547 = vrsqrt.pop %v546
      %v548 = vmul.f32 %v536, %v547
      %v549 = vld [vmem:[%s6] sm:$0xf]
      %v550 = vmul.f32 %v548, %v549
      %v551 = vld [vmem:[%s7] sm:$0xf]
      %v552 = vadd.f32 %v550, %v551
      %v553 = vxor.u32 %v552, 2147483648
      %v554 = vmul.f32 %v553, 1.442695
      %v555 = vpow.pop %v554
      %v556 = vadd.f32 %v555, 1.0
      %v557 = vrcp.pop %v556
      %v558 = vmul.f32 1.0, %v557
      %560 = vset.pattern.permute.xlu0 0
      %561 = vperm.xlu0 %560, %v558
      %v562 = vpop.permute.xlu0 %561
      %v564 = vunpack.c.l.s4 839922192
      %v565 = vunpack.c.0.s8 %v564
      %v566 = vlaneseq
      %v567 = vshrl.u32 %v566, 7
      %v568 = vsub.s32 %v565, %v567
      %v569 = vrot.slane %v562, %v568
      %v571 = vmul.f32 %v306, %v569
      %572 = vst [vmem:[%s305] sm:$0xff] %v571
      %p573 = scmp.lt.s32.totalorder %s19, 1
      %s574 = scalar_select %p573, %s19, 1
      %s575 = smul.addr %s574, 2
      %s576 = smul.addr %s575, 4
      %s577 = scalar_lea.vmem %s8, %s576
      // Predicated region
      $region53: #{channel_only_branch.1} parent=51 // pred_check
        %p578 = pneg %p210
      $region54: #{channel_only_branch.1} parent=51 // pred_check_branch
        %580 = sbr.rel (%p578) target = $region56
      $region55: #{channel_only_branch.1} parent=51 // pred_region
        _
      $region56: #{channel_only_branch.1} parent=51 // pred_fallthru
        _
    $region52: #{channel_only_branch.1} parent=5 // pred_fallthru
      _
    %p581 = scmp.le.s32.totalorder 2, %s14
    // Predicated region
    $region57: #{channel_only_branch.1} parent=5 // pred_check
      %p582 = pneg %p581
    $region58: #{channel_only_branch.1} parent=5 // pred_check_branch
      %584 = sbr.rel (%p582) target = $region60
    $region59: #{channel_only_branch.1} parent=5 // pred_region
      %s585 = ssub.s32 %s14, 2
      // Predicated region
      $region61: #{channel_only_branch.1} parent=59 // pred_check
        %p586 = pneg %p216
      $region62: #{channel_only_branch.1} parent=59 // pred_check_branch
        %588 = sbr.rel (%p586) target = $region64
      $region63: #{channel_only_branch.1} parent=59 // pred_region
        %p589 = scmp.lt.s32.totalorder %s20, 1
        %s590 = scalar_select %p589, %s20, 1
        %s591 = smul.addr %s590, 2
        %s592 = smul.addr %s591, 4
        %s593 = scalar_lea.vmem %s8, %s592
      $region64: #{channel_only_branch.1} parent=59 // pred_fallthru
        _
    $region60: #{channel_only_branch.1} parent=5 // pred_fallthru
      _
  $region6: #{channel_only_branch.1} parent=0 // loop_footer
    %s18 = sadd.s32 1, %s14
  $region7: #{channel_only_branch.1} parent=0 // loop_footer_branch
    %13 = sbr.rel target = $region3
  $region8: #{channel_only_branch.1} parent=0 // loop_exit
    _

</llo_original>
